<compile_context>
chip_gen: v6e
topology: v6e:2x2x1
jax: 0.10.0
libtpu: 0.0.40
codegen_flags: <defaults>
</compile_context>

<pallas_src>
import functools

import jax
import jax.numpy as jnp
from jax.experimental import pallas as pl
from jax.experimental.pallas import tpu as pltpu


@functools.lru_cache(maxsize=None)
def _make_loss_step(w_img: float, w_zbuf: float):
    """Build a jitted fused step fn with the weights baked in as constants."""

    def _kernel(l0_ref, l1_ref, sums_ref, cnt_ref,
                total_ref, sums_out_ref, cnt_out_ref):
        # All refs are SMEM scalars/vectors; runs entirely on the scalar unit.
        #   l0_ref:       (1,) f32  loss_img
        #   l1_ref:       (1,) f32  loss_zbuf
        #   sums_ref:     (2,) f32  running (unweighted) loss sums   (aliased in)
        #   cnt_ref:      (1,) i32  running step count               (aliased in)
        #   total_ref:    (1,) f32  weighted total loss (forward() output)
        #   sums_out_ref: (2,) f32  updated running sums  (aliases sums_ref)
        #   cnt_out_ref:  (1,) i32  updated step count    (aliases cnt_ref)
        l0 = l0_ref[0]
        l1 = l1_ref[0]
        total_ref[0] = jnp.float32(w_img) * l0 + jnp.float32(w_zbuf) * l1
        sums_out_ref[0] = sums_ref[0] + l0
        sums_out_ref[1] = sums_ref[1] + l1
        cnt_out_ref[0] = cnt_ref[0] + 1

    smem = pl.BlockSpec(memory_space=pltpu.SMEM)
    call = pl.pallas_call(
        _kernel,
        out_shape=(
            jax.ShapeDtypeStruct((1,), jnp.float32),   # weighted total
            jax.ShapeDtypeStruct((2,), jnp.float32),   # updated running sums
            jax.ShapeDtypeStruct((1,), jnp.int32),     # updated count
        ),
        in_specs=[smem, smem, smem, smem],
        out_specs=(smem, smem, smem),
        # inputs:  0=l0, 1=l1, 2=sums, 3=count
        # outputs: 0=total, 1=new_sums, 2=new_count
        input_output_aliases={2: 1, 3: 2},             # in-place state update
    )

    @functools.partial(jax.jit, donate_argnums=(2, 3))
    def step(loss_img, loss_zbuf, sums, count):
        # Cast / reshape inside jit so the whole step is one dispatch.
        l0 = jnp.asarray(loss_img, jnp.float32).reshape((1,))
        l1 = jnp.asarray(loss_zbuf, jnp.float32).reshape((1,))
        total, new_sums, new_count = call(l0, l1, sums, count)
        return total[0], new_sums, new_count

    return step


class Params:
    def __init__(self, loss_img_weight=1.0, loss_zbuf_weight=0.5):
        self.loss_img_weight = loss_img_weight
        self.loss_zbuf_weight = loss_zbuf_weight


class LossRecorder:
    """JAX/Pallas port of the PyTorch LossRecorder module.

    forward() computes
        loss_img_weight*loss_img + loss_zbuf_weight*loss_zbuf
    and accumulates the unweighted running sums / count ON DEVICE, in place
    (aliased + donated buffers).  Host readback only happens in return_avg().

    Note: matching the PyTorch spec, forward() already performs the
    add_loss() accumulation internally — do not also call add_loss() for the
    same step or the losses will be counted twice (same as the original).
    """

    def __init__(self, params: Params):
        self.params = params
        self.loss_dict = {"loss_img": 0.0, "loss_zbuf": 0.0}
        # Python-side counter kept only for API compatibility (no device read).
        self.loss_count = 0
        # One fused, jitted step fn with the weights baked in as constants.
        self._step = _make_loss_step(float(params.loss_img_weight),
                                     float(params.loss_zbuf_weight))
        # Device-side running state (updated in place via aliasing/donation).
        self._avg_sums = jnp.zeros((2,), jnp.float32)
        self._count = jnp.zeros((1,), jnp.int32)

    def add_loss(self, loss_list):
        # Same fused/aliased kernel path as forward(); the weighted total is
        # simply discarded.  No per-step host sync, no eager dispatch chain.
        _, self._avg_sums, self._count = self._step(
            loss_list[0], loss_list[1], self._avg_sums, self._count)
        self.loss_count += 1

    def forward(self, loss_list):
        # Single fused kernel: weighted total + in-place sums/count update.
        total, self._avg_sums, self._count = self._step(
            loss_list[0], loss_list[1], self._avg_sums, self._count)
        self.loss_count += 1          # Python mirror, no device sync
        return total

    __call__ = forward

    def update_loss_dict(self, loss_list):
        self.loss_dict["loss_img"] = loss_list[0]
        self.loss_dict["loss_zbuf"] = loss_list[1]

    def return_avg(self, summary_writer=None, current_iteration=None):
        # Only place where we transfer device -> host (logging time).
        count = int(jax.device_get(self._count)[0])
        if count == 0:
            print("error occur in loss record")
            return 0
        sums = jax.device_get(self._avg_sums)
        out = [float(sums[i]) / count for i in range(sums.shape[0])]
        # Reset running state.
        self._avg_sums = jnp.zeros((2,), jnp.float32)
        self._count = jnp.zeros((1,), jnp.int32)
        self.loss_count = 0
        return out

    def clear_loss(self):
        pass


if __name__ == "__main__":
    key = jax.random.PRNGKey(0)
    k1, k2 = jax.random.split(key)
    # Two scalar losses, as the module's forward implies.
    loss_img = jnp.abs(jax.random.normal(k1, (), jnp.float32))
    loss_zbuf = jnp.abs(jax.random.normal(k2, (), jnp.float32))

    params = Params(loss_img_weight=1.0, loss_zbuf_weight=0.5)
    recorder = LossRecorder(params)

    # Two training-style steps; no host sync inside forward().
    total1 = recorder([loss_img, loss_zbuf])
    total2 = recorder([loss_img, loss_zbuf])
    total2 = jax.block_until_ready(total2)

    # Cross-check against plain JAX reference.
    ref = (params.loss_img_weight * loss_img
           + params.loss_zbuf_weight * loss_zbuf)
    assert abs(float(total1) - float(ref)) < 1e-6, (float(total1), float(ref))
    assert abs(float(total2) - float(ref)) < 1e-6, (float(total2), float(ref))
    assert recorder.loss_count == 2

    # Device-side running average matches the unweighted losses.
    avgs = recorder.return_avg()
    assert abs(avgs[0] - float(loss_img)) < 1e-6, (avgs[0], float(loss_img))
    assert abs(avgs[1] - float(loss_zbuf)) < 1e-6, (avgs[1], float(loss_zbuf))
    assert recorder.loss_count == 0

    # add_loss() standalone path (same kernel, total discarded).
    recorder.add_loss([loss_img, loss_zbuf])
    avgs2 = recorder.return_avg()
    assert abs(avgs2[0] - float(loss_img)) < 1e-6, (avgs2[0], float(loss_img))
    assert abs(avgs2[1] - float(loss_zbuf)) < 1e-6, (avgs2[1], float(loss_zbuf))

    print("KERNEL_OK")
</pallas_src>

<mosaic_0001>
module attributes {stable_mosaic.version = 11 : i64} {
  func.func @_kernel(%arg0: memref<1xf32, #tpu.memory_space<smem>>, %arg1: memref<1xf32, #tpu.memory_space<smem>>, %arg2: memref<2xf32, #tpu.memory_space<smem>>, %arg3: memref<1xi32, #tpu.memory_space<smem>>, %arg4: memref<1xf32, #tpu.memory_space<smem>>, %arg5: memref<2xf32, #tpu.memory_space<smem>>, %arg6: memref<1xi32, #tpu.memory_space<smem>>) attributes {dimension_semantics = [], scalar_prefetch = 0 : i64, scratch_operands = 0 : i64, tpu.core_type = #tpu.core_type<tc>} {
    %c0 = arith.constant 0 : index
    %0 = memref.load %arg0[%c0] : memref<1xf32, #tpu.memory_space<smem>>
    %c0_0 = arith.constant 0 : index
    %1 = memref.load %arg1[%c0_0] : memref<1xf32, #tpu.memory_space<smem>>
    %cst = arith.constant 1.000000e+00 : f32
    %2 = arith.mulf %cst, %0 : f32
    %cst_1 = arith.constant 5.000000e-01 : f32
    %3 = arith.mulf %cst_1, %1 : f32
    %4 = arith.addf %2, %3 : f32
    %c0_2 = arith.constant 0 : index
    %5 = memref.load %arg4[%c0_2] : memref<1xf32, #tpu.memory_space<smem>>
    memref.store %4, %arg4[%c0_2] : memref<1xf32, #tpu.memory_space<smem>>
    %c0_3 = arith.constant 0 : index
    %6 = memref.load %arg2[%c0_3] : memref<2xf32, #tpu.memory_space<smem>>
    %7 = arith.addf %6, %0 : f32
    %c0_4 = arith.constant 0 : index
    %8 = memref.load %arg5[%c0_4] : memref<2xf32, #tpu.memory_space<smem>>
    memref.store %7, %arg5[%c0_4] : memref<2xf32, #tpu.memory_space<smem>>
    %c1 = arith.constant 1 : index
    %9 = memref.load %arg2[%c1] : memref<2xf32, #tpu.memory_space<smem>>
    %10 = arith.addf %9, %1 : f32
    %c1_5 = arith.constant 1 : index
    %11 = memref.load %arg5[%c1_5] : memref<2xf32, #tpu.memory_space<smem>>
    memref.store %10, %arg5[%c1_5] : memref<2xf32, #tpu.memory_space<smem>>
    %c0_6 = arith.constant 0 : index
    %12 = memref.load %arg3[%c0_6] : memref<1xi32, #tpu.memory_space<smem>>
    %c1_i32 = arith.constant 1 : i32
    %13 = arith.addi %12, %c1_i32 : i32
    %c0_7 = arith.constant 0 : index
    %14 = memref.load %arg6[%c0_7] : memref<1xi32, #tpu.memory_space<smem>>
    memref.store %13, %arg6[%c0_7] : memref<1xi32, #tpu.memory_space<smem>>
    return
  }
}

</mosaic_0001>

<llo_original>
// kernel: step.1
$region0: #{step.1}
  #allocation0 [shape = 'u32[]', space=smem, size = 0x4, offset = 0x4, fixed_abs, tag = 'smem constant byte address 0x4 - core index']
  #allocation1 [shape = 'u32[144,128]{1,0:T(1,128)}', space=vmem, size = 0x12000, scoped, tag = 'internal scratch']
  #allocation2 [shape = 'f32[1]{0:T(128)S(6)}', space=smem, size = 0x200, scoped, tag = 'scoped memory for step.1']
  #allocation3 [shape = 'f32[1]{0:T(128)S(6)}', space=smem, size = 0x200, scoped, tag = 'scoped memory for step.1']
  #allocation4 [shape = 's32[1]{0:T(128)S(6)}', space=smem, size = 0x200, scoped, tag = 'scoped memory for step.1']
  %s0 = inlined_call_operand.<no memory space> [shape: f32[1], index: 0, kind: input, shape index: {}]
  %s1 = inlined_call_operand.<no memory space> [shape: f32[1], index: 1, kind: input, shape index: {}]
  %s2 = inlined_call_operand.vmem [shape: f32[2], index: 2, kind: input, shape index: {}, may-alias: {2,5}]
  %s3 = inlined_call_operand.<no memory space> [shape: s32[1], index: 3, kind: input, shape index: {}, may-alias: {3,6}]
  %s4 = inlined_call_operand.hbm [shape: f32[1], index: 4, kind: output, shape index: {0}]
  %s5 = inlined_call_operand.vmem [shape: f32[2], index: 5, kind: output, shape index: {1}, may-alias: {2,5}]
  %s6 = inlined_call_operand.hbm [shape: s32[1], index: 6, kind: output, shape index: {2}, may-alias: {3,6}]
  %7 = xla_tuple %s4, %s5, %s6
  %s8 = sld [smem:[#allocation0]]
  $region46: #{step.1} parent=0
    _
  %s10 = ssub.s32 1, %s8
  %s11 = scalar_select 0, %s10, %s8
  %12 = sst [smem:[#allocation2]] %s0
  %13 = sst [smem:[#allocation3]] %s1
  %14 = sst [smem:[#allocation4]] %s3
  $region1: #{step.1} parent=0
    #allocation5 [shape = 'u8[512]{0}', space=smem, size = 0x200, scoped, tag = 'input window, operand 2, single buffered']
    #allocation6 [shape = 's32[1]{0}', space=sflag, size = 0x4, scoped, tag = 'scoped memory for step.1']
    #allocation7 [shape = 's32[1]{0}', space=sflag, size = 0x4, scoped, tag = 'scoped memory for step.1']
    #allocation8 [shape = 's32[1]{0}', space=sflag, size = 0x4, scoped, tag = 'scoped memory for step.1']
    #allocation9 [shape = 'u8[512]{0}', space=smem, size = 0x200, scoped, tag = 'output window, operand 0, single buffered']
    #allocation10 [shape = 'u8[512]{0}', space=smem, size = 0x200, scoped, tag = 'output window, operand 1, single buffered']
    #allocation11 [shape = 'u8[512]{0}', space=smem, size = 0x200, scoped, tag = 'output window, operand 2, single buffered']
    #allocation12 [shape = 's32[1]{0}', space=sflag, size = 0x4, scoped, tag = 'scoped memory for step.1']
    %15 = vsyncpa [#allocation7], 0
    %16 = vsyncpa [#allocation6], 0
    %17 = vsyncpa [#allocation8], 0
    %18 = vsyncpa [#allocation12], 0
    // Predicated region
    $region2: #{step.1} parent=1 // pred_check
      _
    $region3: #{step.1} parent=1 // pred_check_branch
      %20 = sbr.rel (0) target = $region5
    $region4: #{step.1} parent=1 // pred_region
      _
    $region5: #{step.1} parent=1 // pred_fallthru
      _
    // Predicated region
    $region6: #{step.1} parent=1 // pred_check
      _
    $region7: #{step.1} parent=1 // pred_check_branch
      %22 = sbr.rel (0) target = $region9
    $region8: #{step.1} parent=1 // pred_region
      _
    $region9: #{step.1} parent=1 // pred_fallthru
      _
    // Predicated region
    $region10: #{step.1} parent=1 // pred_check
      _
    $region11: #{step.1} parent=1 // pred_check_branch
      %24 = sbr.rel (0) target = $region13
    $region12: #{step.1} parent=1 // pred_region
      %s26 = ssub.s32 16, 16
      %27 = vsyncadd [#allocation7], %s26
      %s29 = sshll.u32 %s2, 4
      %s30 = int_to_ptr.vmem [resolvable:$true] %s29
      %32 = dma.vmem_to_smem %s30, 16, [#allocation5], [#allocation7]
    $region13: #{step.1} parent=1 // pred_fallthru
      _
    // Predicated region
    $region14: #{step.1} parent=1 // pred_check
      _
    $region15: #{step.1} parent=1 // pred_check_branch
      %34 = sbr.rel (0) target = $region17
    $region16: #{step.1} parent=1 // pred_region
      _
    $region17: #{step.1} parent=1 // pred_fallthru
      _
    // Predicated region
    $region18: #{step.1} parent=1 // pred_check
      _
    $region19: #{step.1} parent=1 // pred_check_branch
      %36 = sbr.rel (0) target = $region21
    $region20: #{step.1} parent=1 // pred_region
      %37 = dma.done [#allocation7], 16
    $region21: #{step.1} parent=1 // pred_fallthru
      _
    %38 = sfence
    %s39 = sld [smem:[#allocation2]]
    %s40 = sld [smem:[#allocation3]]
    %s41 = smul.f32 %s40, 0.5
    %s42 = sadd.f32 %s39, %s41
    %s43 = scalar_lea.smem [#allocation9], 0
    %44 = sst [smem:[%s43]] %s42
    %s45 = sld [smem:[#allocation5]]
    %s46 = sadd.f32 %s45, %s39
    %s47 = scalar_lea.smem [#allocation10], 0
    %48 = sst [smem:[%s47]] %s46
    %s49 = sld [smem:[#allocation5 + $0x1]]
    %s50 = sadd.f32 %s49, %s40
    %s51 = scalar_lea.smem [#allocation10], 1
    %52 = sst [smem:[%s51]] %s50
    %s53 = sld [smem:[#allocation4]]
    %s54 = sadd.s32 %s53, 1
    %s55 = scalar_lea.smem [#allocation11], 0
    %56 = sst [smem:[%s55]] %s54
    // Predicated region
    $region22: #{step.1} parent=1 // pred_check
      _
    $region23: #{step.1} parent=1 // pred_check_branch
      %58 = sbr.rel (0) target = $region25
    $region24: #{step.1} parent=1 // pred_region
      %s60 = ssub.s32 16, 16
      %61 = vsyncadd [#allocation6], %s60
      %64 = dma.smem_to_hbm [#allocation9], 16, %s4, [#allocation6]
    $region25: #{step.1} parent=1 // pred_fallthru
      _
    // Predicated region
    $region26: #{step.1} parent=1 // pred_check
      _
    $region27: #{step.1} parent=1 // pred_check_branch
      %66 = sbr.rel (0) target = $region29
    $region28: #{step.1} parent=1 // pred_region
      %s68 = ssub.s32 16, 16
      %69 = vsyncadd [#allocation8], %s68
      %s71 = sshll.u32 %s5, 4
      %s72 = int_to_ptr.vmem [resolvable:$true] %s71
      %74 = dma.smem_to_vmem [#allocation10], 16, %s72, [#allocation8]
    $region29: #{step.1} parent=1 // pred_fallthru
      _
    // Predicated region
    $region30: #{step.1} parent=1 // pred_check
      _
    $region31: #{step.1} parent=1 // pred_check_branch
      %76 = sbr.rel (0) target = $region33
    $region32: #{step.1} parent=1 // pred_region
      %s78 = ssub.s32 16, 16
      %79 = vsyncadd [#allocation12], %s78
      %82 = dma.smem_to_hbm [#allocation11], 16, %s6, [#allocation12]
    $region33: #{step.1} parent=1 // pred_fallthru
      _
    // Predicated region
    $region34: #{step.1} parent=1 // pred_check
      _
    $region35: #{step.1} parent=1 // pred_check_branch
      %84 = sbr.rel (0) target = $region37
    $region36: #{step.1} parent=1 // pred_region
      %85 = dma.done [#allocation6], 16
    $region37: #{step.1} parent=1 // pred_fallthru
      _
    // Predicated region
    $region38: #{step.1} parent=1 // pred_check
      _
    $region39: #{step.1} parent=1 // pred_check_branch
      %87 = sbr.rel (0) target = $region41
    $region40: #{step.1} parent=1 // pred_region
      %88 = dma.done [#allocation8], 16
    $region41: #{step.1} parent=1 // pred_fallthru
      _
    // Predicated region
    $region42: #{step.1} parent=1 // pred_check
      _
    $region43: #{step.1} parent=1 // pred_check_branch
      %90 = sbr.rel (0) target = $region45
    $region44: #{step.1} parent=1 // pred_region
      %91 = dma.done [#allocation12], 16
    $region45: #{step.1} parent=1 // pred_fallthru
      _
    %92 = sfence
    %93 = vsyncpa [#allocation6], 1
    %94 = vsyncpa [#allocation12], 1
    %95 = vsyncpa [#allocation7], 1
    %96 = vsyncpa [#allocation8], 1

</llo_original>
